<compile_context>
chip_gen: v5e
topology: v5e:2x2
jax: 0.10.0
libtpu: 0.0.40
codegen_flags: <defaults>
</compile_context>

<pallas_src>
import jax
import jax.numpy as jnp
from jax.experimental import pallas as pl
from jax.experimental.pallas import tpu as pltpu

CLS_FLAG = 0.4        # Detector.cls_flag
GRAD_CLIP = 0.1       # clip_gradient default


# ----------------------------------------------------------------------------
# Kernel A: fused RL reward/loss + reward means + cls matmul + argmax.
# ----------------------------------------------------------------------------
def _fused_rl_senti_kernel(lp_ref, mask_ref, fr_ref, cr_ref, feat_ref, w_ref,
                           scalars_ref, label_ref):
    # casts happen in-kernel after load (no wrapper-side pre-cast ops)
    lp = lp_ref[...].astype(jnp.float32)            # (B, T) sample log-probs
    mask = mask_ref[...].astype(jnp.float32)        # (B, T) sequence masks
    fr = fr_ref[...].astype(jnp.float32)            # (B, T) fact reward
    cr = cr_ref[...].astype(jnp.float32)            # (B, T) cls reward

    # ---- reward combination + RewardCriterion RL loss (full reductions) ----
    rewards = fr + CLS_FLAG * cr
    num = -jnp.sum(lp * rewards * mask)
    den = jnp.sum(mask)
    # all four scalars packed into one SMEM f32[4] output
    scalars_ref[0] = jnp.where(den > 0.0, num / den, 0.0)   # cap_loss (0/0 guard)
    scalars_ref[1] = jnp.mean(rewards)                      # all_rewards
    scalars_ref[2] = jnp.mean(fr[:, 0:1])                   # fact_reward[:, 0].mean()
    scalars_ref[3] = jnp.mean(cr)                           # cls_reward.mean(-1).mean(-1)

    # ---- xe_senti_labels = argmax(softmax(logits, -1), -1) -----------------
    # softmax is monotone, so argmax(softmax(x)) == argmax(x): skip the exp.
    logits = jnp.dot(feat_ref[...].astype(jnp.float32),
                     w_ref[...].astype(jnp.float32),
                     preferred_element_type=jnp.float32)      # (B, C)
    C = logits.shape[1]
    row_max = jnp.max(logits, axis=-1, keepdims=True)
    idx = jax.lax.broadcasted_iota(jnp.int32, logits.shape, 1).astype(jnp.float32)
    # first index attaining the max (matches torch.argmax tie-break)
    cand = jnp.where(logits == row_max, idx, jnp.float32(C))
    row_min = jnp.min(cand, axis=-1, keepdims=True)           # single XLU reduce
    label_ref[...] = row_min.astype(jnp.int32)                # one tiny (B,1) store


def _rl_loss_and_senti_labels(sample_logprobs, seq_masks, fact_reward,
                              cls_reward, sent_feats, cls_proj):
    B, T = sample_logprobs.shape
    H, C = cls_proj.shape
    smem_out = pl.BlockSpec(memory_space=pltpu.MemorySpace.SMEM)
    out_shapes = (
        jax.ShapeDtypeStruct((4,), jnp.float32),    # [cap_loss, all_rewards,
                                                    #  fact_reward_mean, cls_reward_mean]
        jax.ShapeDtypeStruct((B, 1), jnp.int32),    # xe_senti_labels
    )
    scalars, labels2d = pl.pallas_call(
        _fused_rl_senti_kernel,
        out_shape=out_shapes,
        in_specs=[pl.BlockSpec((B, T), lambda: (0, 0)),   # sample_logprobs
                  pl.BlockSpec((B, T), lambda: (0, 0)),   # seq_masks
                  pl.BlockSpec((B, T), lambda: (0, 0)),   # fact_reward
                  pl.BlockSpec((B, T), lambda: (0, 0)),   # cls_reward
                  pl.BlockSpec((B, H), lambda: (0, 0)),   # sent_feats
                  pl.BlockSpec((H, C), lambda: (0, 0))],  # cls_proj
        out_specs=(smem_out, pl.BlockSpec((B, 1), lambda: (0, 0))),
    )(sample_logprobs, seq_masks, fact_reward, cls_reward, sent_feats, cls_proj)
    return (scalars[0], scalars[1], scalars[2], scalars[3], labels2d[:, 0])


# jit so the post-kernel scalar unpacking / label squeeze fuse into one dispatch
rl_loss_and_senti_labels = jax.jit(_rl_loss_and_senti_labels)


# ----------------------------------------------------------------------------
# Kernel B: clip_gradient — tiled element-wise clamp to [-GRAD_CLIP, GRAD_CLIP],
# truly in place (input_output_aliases + donated input), lane-aligned blocks.
# ----------------------------------------------------------------------------
def _clip_block_shape():
    # Generation-aware block sizing (4 buffers x block must fit scoped VMEM):
    #   v6e/v7x: 4 MiB blocks (16 MiB total, 32 MiB scoped default)
    #   v5e / unknown: 2 MiB blocks (8 MiB total, 16 MiB scoped default)
    try:
        kind = jax.devices()[0].device_kind.lower()
    except Exception:
        kind = ""
    if ("v6" in kind) or ("v7" in kind):
        return 1024, 1024
    return 512, 1024


_CLIP_BLK_R, _CLIP_BLK_C = _clip_block_shape()


def _clip_kernel(g_ref, o_ref):
    o_ref[...] = jnp.clip(g_ref[...], -GRAD_CLIP, GRAD_CLIP)


def _clip_2d(grad):
    R, C = grad.shape
    # block == full extent on small dims; otherwise (8,128)-aligned tiles.
    br = R if R <= _CLIP_BLK_R else _CLIP_BLK_R
    bc = C if C <= _CLIP_BLK_C else _CLIP_BLK_C
    grid = (pl.cdiv(R, br), pl.cdiv(C, bc))
    return pl.pallas_call(
        _clip_kernel,
        out_shape=jax.ShapeDtypeStruct((R, C), grad.dtype),
        grid=grid,
        in_specs=[pl.BlockSpec((br, bc), lambda i, j: (i, j))],
        out_specs=pl.BlockSpec((br, bc), lambda i, j: (i, j)),
        input_output_aliases={0: 0},   # clamp in place on the gradient buffer
        compiler_params=pltpu.CompilerParams(
            dimension_semantics=("parallel", "parallel")),
    )(grad)


def _clip_any(grad):
    if grad.ndim == 2:
        return _clip_2d(grad)
    # ragged / flattened gradients: reshape to a lane-dense 2-D slab so stores
    # are unmasked vst (layout plumbing only, no extra compute).
    n = grad.size
    flat = grad.reshape(-1)
    for w in (2048, 1024, 512, 256, 128):
        if n % w == 0:
            return _clip_2d(flat.reshape(n // w, w)).reshape(grad.shape)
    return _clip_2d(flat.reshape(1, n)).reshape(grad.shape)


# donate the gradient buffer so XLA does not insert a defensive copy and the
# input_output_aliases clip is genuinely in place. NOTE: callers must not read
# the original `grads` array after this call.
clip_gradient = jax.jit(_clip_any, donate_argnums=0)


# ----------------------------------------------------------------------------
# Detector-style wrapper (single simplified step of the training loop body).
# ----------------------------------------------------------------------------
class Detector:
    def __init__(self, num_senti_categories=8, hidden=32, seed=0):
        # Deterministic synthetic parameter stand-ins (the real Captioner /
        # SentimentDetector / classifier weights live in external submodules).
        k = jax.random.PRNGKey(seed)
        k1, _ = jax.random.split(k)
        self.cls_proj = jax.random.normal(
            k1, (hidden, num_senti_categories), jnp.float32) * 0.02
        self.cls_flag = CLS_FLAG
        self.seq_flag = 1.0
        self.senti_threshold = 0.7

    def forward_step(self, sample_logprobs, seq_masks, fact_reward, cls_reward,
                     sent_feats, grads):
        # TODO(synk): Captioner / SentimentDetector / SentenceSentimentClassifier
        # sampling, CIDEr self-critical reward, optimizer step and tqdm data
        # iteration are external training-loop machinery, not kernel compute.
        (cap_loss, all_rewards, fact_rew_mean, cls_rew_mean,
         xe_senti_labels) = rl_loss_and_senti_labels(
            sample_logprobs, seq_masks, fact_reward, cls_reward,
            sent_feats, self.cls_proj)
        clipped_grads = clip_gradient(grads)   # donates `grads`
        losses = {
            "cap_loss": cap_loss,
            "all_rewards": all_rewards,
            # matches the PyTorch reference's asymmetry:
            # fact_reward[:, 0].mean()  vs  cls_reward.mean(-1).mean(-1)
            "fact_reward": fact_rew_mean,
            "cls_reward": cls_rew_mean,
        }
        return losses, xe_senti_labels, clipped_grads


if __name__ == "__main__":
    B, T, H, C = 4, 16, 32, 8          # batch, seq, hidden, sentiment categories
    GR, GC = 2048, 2048                # gradient tensor (>= 4 blocks -> 2+ per TC)
    key = jax.random.PRNGKey(0)
    ks = jax.random.split(key, 6)

    sample_logprobs = -jnp.abs(jax.random.normal(ks[0], (B, T), jnp.float32))
    seq_masks = (jax.random.uniform(ks[1], (B, T)) > 0.3).astype(jnp.float32)
    seq_masks = seq_masks.at[:, 0].set(1.0)             # avoid all-zero mask
    fact_reward = jax.random.normal(ks[2], (B, T), jnp.float32)
    cls_reward = jax.random.normal(ks[3], (B, T), jnp.float32)
    sent_feats = jax.random.normal(ks[4], (B, H), jnp.float32)
    grads = 0.5 * jax.random.normal(ks[5], (GR, GC), jnp.float32)

    det = Detector(num_senti_categories=C, hidden=H, seed=0)

    # plain-JAX references — computed BEFORE forward_step, because the clip
    # kernel donates (and aliases) the `grads` buffer.
    rewards_ref = fact_reward + CLS_FLAG * cls_reward
    loss_ref = -jnp.sum(sample_logprobs * rewards_ref * seq_masks) / jnp.sum(seq_masks)
    rew_mean_ref = jnp.mean(rewards_ref)
    fact_rew_ref = jnp.mean(fact_reward[:, 0])
    cls_rew_ref = jnp.mean(cls_reward)
    labels_ref = jnp.argmax(sent_feats @ det.cls_proj, axis=-1).astype(jnp.int32)
    clip_ref = jnp.clip(grads, -GRAD_CLIP, GRAD_CLIP)
    jax.block_until_ready((loss_ref, rew_mean_ref, fact_rew_ref, cls_rew_ref,
                           labels_ref, clip_ref))

    losses, xe_senti_labels, clipped = det.forward_step(
        sample_logprobs, seq_masks, fact_reward, cls_reward, sent_feats, grads)
    jax.block_until_ready((losses, xe_senti_labels, clipped))

    assert jnp.allclose(losses["cap_loss"], loss_ref, rtol=1e-5, atol=1e-5)
    assert jnp.allclose(losses["all_rewards"], rew_mean_ref, rtol=1e-5, atol=1e-5)
    assert jnp.allclose(losses["fact_reward"], fact_rew_ref, rtol=1e-5, atol=1e-5)
    assert jnp.allclose(losses["cls_reward"], cls_rew_ref, rtol=1e-5, atol=1e-5)
    assert jnp.array_equal(xe_senti_labels, labels_ref)
    assert jnp.allclose(clipped, clip_ref)

    print("KERNEL_OK")
</pallas_src>

<mosaic_0001>
module attributes {stable_mosaic.version = 11 : i64} {
  func.func @_fused_rl_senti_kernel(%arg0: memref<4x16xf32, #tpu.memory_space<vmem>>, %arg1: memref<4x16xf32, #tpu.memory_space<vmem>>, %arg2: memref<4x16xf32, #tpu.memory_space<vmem>>, %arg3: memref<4x16xf32, #tpu.memory_space<vmem>>, %arg4: memref<4x32xf32, #tpu.memory_space<vmem>>, %arg5: memref<32x8xf32, #tpu.memory_space<vmem>>, %arg6: memref<4xf32, #tpu.memory_space<smem>>, %arg7: memref<4x1xi32, #tpu.memory_space<vmem>>) attributes {dimension_semantics = [], scalar_prefetch = 0 : i64, scratch_operands = 0 : i64, tpu.core_type = #tpu.core_type<tc>} {
    %c0 = arith.constant 0 : index
    %c0_0 = arith.constant 0 : index
    %0 = vector.load %arg0[%c0, %c0_0] : memref<4x16xf32, #tpu.memory_space<vmem>>, vector<4x16xf32>
    %c0_1 = arith.constant 0 : index
    %c0_2 = arith.constant 0 : index
    %1 = vector.load %arg1[%c0_1, %c0_2] : memref<4x16xf32, #tpu.memory_space<vmem>>, vector<4x16xf32>
    %c0_3 = arith.constant 0 : index
    %c0_4 = arith.constant 0 : index
    %2 = vector.load %arg2[%c0_3, %c0_4] : memref<4x16xf32, #tpu.memory_space<vmem>>, vector<4x16xf32>
    %c0_5 = arith.constant 0 : index
    %c0_6 = arith.constant 0 : index
    %3 = vector.load %arg3[%c0_5, %c0_6] : memref<4x16xf32, #tpu.memory_space<vmem>>, vector<4x16xf32>
    %cst = arith.constant 4.000000e-01 : f32
    %4 = vector.broadcast %cst : f32 to vector<4x16xf32>
    %5 = arith.mulf %4, %3 : vector<4x16xf32>
    %6 = arith.addf %2, %5 : vector<4x16xf32>
    %7 = arith.mulf %0, %6 : vector<4x16xf32>
    %8 = arith.mulf %7, %1 : vector<4x16xf32>
    %9 = vector.shape_cast %8 : vector<4x16xf32> to vector<1x4x16xf32>
    %cst_7 = arith.constant dense<0.000000e+00> : vector<1xf32>
    %10 = vector.multi_reduction <add>, %9, %cst_7 [1, 2] : vector<1x4x16xf32> to vector<1xf32>
    %11 = vector.shape_cast %10 : vector<1xf32> to vector<1x1x1xf32>
    %12 = vector.extract %11[0, 0, 0] : f32 from vector<1x1x1xf32>
    %cst_8 = arith.constant 0.000000e+00 : f32
    %13 = arith.subf %cst_8, %12 : f32
    %14 = vector.shape_cast %1 : vector<4x16xf32> to vector<1x4x16xf32>
    %cst_9 = arith.constant dense<0.000000e+00> : vector<1xf32>
    %15 = vector.multi_reduction <add>, %14, %cst_9 [1, 2] : vector<1x4x16xf32> to vector<1xf32>
    %16 = vector.shape_cast %15 : vector<1xf32> to vector<1x1x1xf32>
    %17 = vector.extract %16[0, 0, 0] : f32 from vector<1x1x1xf32>
    %cst_10 = arith.constant 0.000000e+00 : f32
    %18 = arith.cmpf ogt, %17, %cst_10 : f32
    %19 = arith.divf %13, %17 : f32
    %cst_11 = arith.constant 0.000000e+00 : f32
    %20 = arith.select %18, %19, %cst_11 : f32
    %c0_12 = arith.constant 0 : index
    %21 = memref.load %arg6[%c0_12] : memref<4xf32, #tpu.memory_space<smem>>
    memref.store %20, %arg6[%c0_12] : memref<4xf32, #tpu.memory_space<smem>>
    %22 = vector.shape_cast %6 : vector<4x16xf32> to vector<1x4x16xf32>
    %cst_13 = arith.constant dense<0.000000e+00> : vector<1xf32>
    %23 = vector.multi_reduction <add>, %22, %cst_13 [1, 2] : vector<1x4x16xf32> to vector<1xf32>
    %24 = vector.shape_cast %23 : vector<1xf32> to vector<1x1x1xf32>
    %25 = vector.extract %24[0, 0, 0] : f32 from vector<1x1x1xf32>
    %cst_14 = arith.constant 6.400000e+01 : f32
    %26 = arith.divf %25, %cst_14 : f32
    %c1 = arith.constant 1 : index
    %27 = memref.load %arg6[%c1] : memref<4xf32, #tpu.memory_space<smem>>
    memref.store %26, %arg6[%c1] : memref<4xf32, #tpu.memory_space<smem>>
    %28 = vector.extract_strided_slice %2 {offsets = [0, 0], sizes = [4, 1], strides = [1, 1]} : vector<4x16xf32> to vector<4x1xf32>
    %29 = vector.shape_cast %28 : vector<4x1xf32> to vector<1x4x1xf32>
    %cst_15 = arith.constant dense<0.000000e+00> : vector<1xf32>
    %30 = vector.multi_reduction <add>, %29, %cst_15 [1, 2] : vector<1x4x1xf32> to vector<1xf32>
    %31 = vector.shape_cast %30 : vector<1xf32> to vector<1x1x1xf32>
    %32 = vector.extract %31[0, 0, 0] : f32 from vector<1x1x1xf32>
    %cst_16 = arith.constant 4.000000e+00 : f32
    %33 = arith.divf %32, %cst_16 : f32
    %c2 = arith.constant 2 : index
    %34 = memref.load %arg6[%c2] : memref<4xf32, #tpu.memory_space<smem>>
    memref.store %33, %arg6[%c2] : memref<4xf32, #tpu.memory_space<smem>>
    %35 = vector.shape_cast %3 : vector<4x16xf32> to vector<1x4x16xf32>
    %cst_17 = arith.constant dense<0.000000e+00> : vector<1xf32>
    %36 = vector.multi_reduction <add>, %35, %cst_17 [1, 2] : vector<1x4x16xf32> to vector<1xf32>
    %37 = vector.shape_cast %36 : vector<1xf32> to vector<1x1x1xf32>
    %38 = vector.extract %37[0, 0, 0] : f32 from vector<1x1x1xf32>
    %cst_18 = arith.constant 6.400000e+01 : f32
    %39 = arith.divf %38, %cst_18 : f32
    %c3 = arith.constant 3 : index
    %40 = memref.load %arg6[%c3] : memref<4xf32, #tpu.memory_space<smem>>
    memref.store %39, %arg6[%c3] : memref<4xf32, #tpu.memory_space<smem>>
    %c0_19 = arith.constant 0 : index
    %c0_20 = arith.constant 0 : index
    %41 = vector.load %arg4[%c0_19, %c0_20] : memref<4x32xf32, #tpu.memory_space<vmem>>, vector<4x32xf32>
    %c0_21 = arith.constant 0 : index
    %c0_22 = arith.constant 0 : index
    %42 = vector.load %arg5[%c0_21, %c0_22] : memref<32x8xf32, #tpu.memory_space<vmem>>, vector<32x8xf32>
    %cst_23 = arith.constant dense<0.000000e+00> : vector<4x8xf32>
    %43 = tpu.matmul %41, %42, %cst_23 {dimension_numbers = #tpu.dot_dimension_numbers<[1], [0], [0], [1], [0, 0, 1, 1], [], []>} : vector<4x32xf32>, vector<32x8xf32>, vector<4x8xf32> -> vector<4x8xf32>
    %cst_24 = arith.constant dense<0xFF800000> : vector<4xf32>
    %44 = vector.multi_reduction <maximumf>, %43, %cst_24 [1] : vector<4x8xf32> to vector<4xf32>
    %45 = vector.shape_cast %44 : vector<4xf32> to vector<4x1xf32>
    %46 = tpu.iota {dimensions = array<i32: 1>} : vector<4x8xi32>
    %47 = arith.sitofp %46 : vector<4x8xi32> to vector<4x8xf32>
    %48 = vector.broadcast %45 : vector<4x1xf32> to vector<4x8xf32>
    %49 = arith.cmpf oeq, %43, %48 : vector<4x8xf32>
    %cst_25 = arith.constant 8.000000e+00 : f32
    %50 = vector.broadcast %cst_25 : f32 to vector<4x8xf32>
    %51 = arith.select %49, %47, %50 : vector<4x8xi1>, vector<4x8xf32>
    %cst_26 = arith.constant dense<0x7F800000> : vector<4xf32>
    %52 = vector.multi_reduction <minimumf>, %51, %cst_26 [1] : vector<4x8xf32> to vector<4xf32>
    %53 = vector.shape_cast %52 : vector<4xf32> to vector<4x1xf32>
    %54 = arith.fptosi %53 : vector<4x1xf32> to vector<4x1xi32>
    %c0_27 = arith.constant 0 : index
    %c0_28 = arith.constant 0 : index
    %55 = vector.load %arg7[%c0_27, %c0_28] : memref<4x1xi32, #tpu.memory_space<vmem>>, vector<4x1xi32>
    tpu.vector_store %arg7[%c0_27, %c0_28], %54 {strides = array<i32>} : memref<4x1xi32, #tpu.memory_space<vmem>>, vector<4x1xi32>,
    return
  }
}

</mosaic_0001>

<llo_original>
// kernel: _rl_loss_and_senti_labels.1
$region0: #{_rl_loss_and_senti_labels.1}
  #allocation0 [shape = 'u32[]', space=smem, size = 0x4, offset = 0x4, fixed_abs, tag = 'smem constant byte address 0x4 - core index']
  #allocation1 [shape = 'u32[72,128]{1,0:T(1,128)}', space=vmem, size = 0x9000, scoped, tag = 'internal scratch']
  %s0 = inlined_call_operand.vmem [shape: f32[4,16], index: 0, kind: input, shape index: {}]
  %s1 = inlined_call_operand.vmem [shape: f32[4,16], index: 1, kind: input, shape index: {}]
  %s2 = inlined_call_operand.vmem [shape: f32[4,16], index: 2, kind: input, shape index: {}]
  %s3 = inlined_call_operand.vmem [shape: f32[4,16], index: 3, kind: input, shape index: {}]
  %s4 = inlined_call_operand.vmem [shape: f32[4,32], index: 4, kind: input, shape index: {}]
  %s5 = inlined_call_operand.vmem [shape: f32[32,8], index: 5, kind: input, shape index: {}]
  %s6 = inlined_call_operand.vmem [shape: f32[4], index: 6, kind: output, shape index: {0}]
  %s7 = inlined_call_operand.vmem [shape: s32[4,1], index: 7, kind: output, shape index: {1}]
  %8 = xla_tuple %s6, %s7
  %s9 = sld [smem:[#allocation0]]
  $region42: #{_rl_loss_and_senti_labels.1} parent=0
    _
  %s11 = ssub.s32 1, %s9
  %s12 = scalar_select 0, %s11, %s9
  $region1: #{_rl_loss_and_senti_labels.1} parent=0
    #allocation2 [shape = 'u8[512]{0}', space=smem, size = 0x200, scoped, tag = 'output window, operand 0, single buffered']
    #allocation3 [shape = 's32[1]{0}', space=sflag, size = 0x4, scoped, tag = 'scoped memory for _rl_loss_and_senti_labels.1']
    %13 = vsyncpa [#allocation3], 0
    // Predicated region
    $region2: #{_rl_loss_and_senti_labels.1} parent=1 // pred_check
      _
    $region3: #{_rl_loss_and_senti_labels.1} parent=1 // pred_check_branch
      %15 = sbr.rel (0) target = $region5
    $region4: #{_rl_loss_and_senti_labels.1} parent=1 // pred_region
      _
    $region5: #{_rl_loss_and_senti_labels.1} parent=1 // pred_fallthru
      _
    // Predicated region
    $region6: #{_rl_loss_and_senti_labels.1} parent=1 // pred_check
      _
    $region7: #{_rl_loss_and_senti_labels.1} parent=1 // pred_check_branch
      %17 = sbr.rel (0) target = $region9
    $region8: #{_rl_loss_and_senti_labels.1} parent=1 // pred_region
      _
    $region9: #{_rl_loss_and_senti_labels.1} parent=1 // pred_fallthru
      _
    // Predicated region
    $region10: #{_rl_loss_and_senti_labels.1} parent=1 // pred_check
      _
    $region11: #{_rl_loss_and_senti_labels.1} parent=1 // pred_check_branch
      %19 = sbr.rel (0) target = $region13
    $region12: #{_rl_loss_and_senti_labels.1} parent=1 // pred_region
      _
    $region13: #{_rl_loss_and_senti_labels.1} parent=1 // pred_fallthru
      _
    // Predicated region
    $region14: #{_rl_loss_and_senti_labels.1} parent=1 // pred_check
      _
    $region15: #{_rl_loss_and_senti_labels.1} parent=1 // pred_check_branch
      %21 = sbr.rel (0) target = $region17
    $region16: #{_rl_loss_and_senti_labels.1} parent=1 // pred_region
      _
    $region17: #{_rl_loss_and_senti_labels.1} parent=1 // pred_fallthru
      _
    // Predicated region
    $region18: #{_rl_loss_and_senti_labels.1} parent=1 // pred_check
      _
    $region19: #{_rl_loss_and_senti_labels.1} parent=1 // pred_check_branch
      %23 = sbr.rel (0) target = $region21
    $region20: #{_rl_loss_and_senti_labels.1} parent=1 // pred_region
      _
    $region21: #{_rl_loss_and_senti_labels.1} parent=1 // pred_fallthru
      _
    // Predicated region
    $region22: #{_rl_loss_and_senti_labels.1} parent=1 // pred_check
      _
    $region23: #{_rl_loss_and_senti_labels.1} parent=1 // pred_check_branch
      %25 = sbr.rel (0) target = $region25
    $region24: #{_rl_loss_and_senti_labels.1} parent=1 // pred_region
      _
    $region25: #{_rl_loss_and_senti_labels.1} parent=1 // pred_fallthru
      _
    %v26 = vld [vmem:[%s0] sm:$0xf]
    %v27 = vld [vmem:[%s1] sm:$0xf]
    %v28 = vld [vmem:[%s2] sm:$0xf]
    %v29 = vld [vmem:[%s3] sm:$0xf]
    %v30 = vmul.f32 %v29, 0.4
    %v31 = vadd.f32 %v28, %v30
    %v32 = vmul.f32 %v26, %v31
    %v33 = vmul.f32 %v32, %v27
    %vm34 = vcmask 125952
    %v35 = vsel %vm34, %v33, 0.0
    %36 = vadd.xlane.f32.xlu0 %v35
    %v37 = vpop.xlane.xlu0 %36
    %v38 = vrot.slane %v37, 4
    %v39 = vadd.f32 %v37, %v38
    %v40 = vrot.slane %v39, 2
    %v41 = vadd.f32 %v39, %v40
    %v42 = vrot.slane %v41, 1
    %v43 = vadd.f32 %v41, %v42
    %s44 = vtos %v43
    %s45 = ssub.f32 0.0, %s44
    %v46 = vsel %vm34, %v27, 0.0
    %47 = vadd.xlane.f32.xlu0 %v46
    %v48 = vpop.xlane.xlu0 %47
    %v49 = vrot.slane %v48, 4
    %v50 = vadd.f32 %v48, %v49
    %v51 = vrot.slane %v50, 2
    %v52 = vadd.f32 %v50, %v51
    %v53 = vrot.slane %v52, 1
    %v54 = vadd.f32 %v52, %v53
    %s55 = vtos %v54
    %p56 = scmp.gt.f32.partialorder %s55, 0.0
    %v57 = vstv %s55
    %v58 = vrcp.pop %v57
    %v59 = vmul.f32 %v57, %v58
    %v60 = vsub.f32 1.0, %v59
    %v61 = vmul.f32 %v58, %v60
    %v62 = vadd.f32 %v58, %v61
    %vm63 = vweird.f32 %v57
    %vm64 = vweird.f32 %v58
    %vm65 = vmor %vm63, %vm64
    %v66 = vsel %vm65, %v58, %v62
    %v67 = vand.u32 2147483647, %v57
    %vm68 = vcmp.eq.f32.partialorder %v67, 8.507059e+37
    %v69 = vand.u32 %v57, 2147483648
    %v70 = vor.u32 1.1754944e-38, %v69
    %v71 = vsel %vm68, %v70, %v66
    %s72 = vtos %v71
    %s73 = smul.f32 %s45, %s72
    %s74 = scalar_select %p56, %s73, 0.0
    %s75 = scalar_lea.smem [#allocation2], 0
    %76 = sst [smem:[%s75]] %s74
    %v77 = vsel %vm34, %v31, 0.0
    %78 = vadd.xlane.f32.xlu0 %v77
    %v79 = vpop.xlane.xlu0 %78
    %v80 = vrot.slane %v79, 4
    %v81 = vadd.f32 %v79, %v80
    %v82 = vrot.slane %v81, 2
    %v83 = vadd.f32 %v81, %v82
    %v84 = vrot.slane %v83, 1
    %v85 = vadd.f32 %v83, %v84
    %s86 = vtos %v85
    %v87 = vrcp.pop 64.0
    %v88 = vmul.f32 64.0, %v87
    %v89 = vsub.f32 1.0, %v88
    %v90 = vmul.f32 %v87, %v89
    %v91 = vadd.f32 %v87, %v90
    %vm92 = vweird.f32 %v87
    %v93 = vsel %vm92, %v87, %v91
    %s94 = vtos %v93
    %s95 = smul.f32 %s86, %s94
    %s96 = scalar_lea.smem [#allocation2], 1
    %97 = sst [smem:[%s96]] %s95
    %vm98 = vcmask 3072
    %v99 = vsel %vm98, %v28, 0.0
    %100 = vadd.xlane.f32.xlu0 %v99
    %v101 = vpop.xlane.xlu0 %100
    %v102 = vrot.slane %v101, 4
    %v103 = vadd.f32 %v101, %v102
    %v104 = vrot.slane %v103, 2
    %v105 = vadd.f32 %v103, %v104
    %v106 = vrot.slane %v105, 1
    %v107 = vadd.f32 %v105, %v106
    %s108 = vtos %v107
    %v109 = vrcp.pop 4.0
    %v110 = vmul.f32 4.0, %v109
    %v111 = vsub.f32 1.0, %v110
    %v112 = vmul.f32 %v109, %v111
    %v113 = vadd.f32 %v109, %v112
    %vm114 = vweird.f32 %v109
    %v115 = vsel %vm114, %v109, %v113
    %s116 = vtos %v115
    %s117 = smul.f32 %s108, %s116
    %s118 = scalar_lea.smem [#allocation2], 2
    %119 = sst [smem:[%s118]] %s117
    %v120 = vsel %vm34, %v29, 0.0
    %121 = vadd.xlane.f32.xlu0 %v120
    %v122 = vpop.xlane.xlu0 %121
    %v123 = vrot.slane %v122, 4
    %v124 = vadd.f32 %v122, %v123
    %v125 = vrot.slane %v124, 2
    %v126 = vadd.f32 %v124, %v125
    %v127 = vrot.slane %v126, 1
    %v128 = vadd.f32 %v126, %v127
    %s129 = vtos %v128
    %v130 = vrcp.pop 64.0
    %v131 = vmul.f32 64.0, %v130
    %v132 = vsub.f32 1.0, %v131
    %v133 = vmul.f32 %v130, %v132
    %v134 = vadd.f32 %v130, %v133
    %vm135 = vweird.f32 %v130
    %v136 = vsel %vm135, %v130, %v134
    %s137 = vtos %v136
    %s138 = smul.f32 %s129, %s137
    %s139 = scalar_lea.smem [#allocation2], 3
    %140 = sst [smem:[%s139]] %s138
    %v141 = vld [vmem:[%s4] sm:$0xf]
    %v142 = vld [vmem:[%s5] sm:$0xff]
    %v143 = vld [vmem:[%s5 + $0x8] sm:$0xff]
    %v144 = vld [vmem:[%s5 + $0x10] sm:$0xff]
    %v145 = vld [vmem:[%s5 + $0x18] sm:$0xff]
    %vm146 = vcmask 261120
    %v148 = vsel %vm146, %v141, 0
    %150 = vmatpush.msra.mxu0 0.0
    %151 = vmatpush.msra.mxu0 0.0
    %152 = vmatpush.msra.mxu0 0.0
    %153 = vmatpush.msra.mxu0 0.0
    %154 = vmatpush.msra.mxu0 0.0
    %155 = vmatpush.msra.mxu0 0.0
    %156 = vmatpush.msra.mxu0 0.0
    %157 = vmatpush.msra.mxu0 0.0
    %158 = vmatpush.msra.mxu0 0.0
    %159 = vmatpush.msra.mxu0 0.0
    %160 = vmatpush.msra.mxu0 0.0
    %161 = vmatpush.msra.mxu0 0.0
    %162 = vmatpush.msra.mxu0 %v145
    %163 = vmatpush.msra.mxu0 %v144
    %164 = vmatpush.msra.mxu0 %v143
    %165 = vmatpush.msra.mxu0 %v142
    %166 = vmatmul.f32.gmra.mxu0 %v148
    %v167 = vpop.f32.mrf.mxu0
    %v168 = vadd.f32 0.0, %v167
    %169 = vdwg.mxu0
    %vm170 = vcmask 60416
    %v171 = vsel %vm170, %v168, -inf
    %172 = vmax.xlane.f32.xlu0 %v171
    %v173 = vpop.xlane.xlu0 %172
    %v174 = vlaneseq
    %v175 = vand.u32 %v174, 127
    %v176 = vcvt.s32.f32 %v175
    %vm177 = vcmp.eq.f32.partialorder %v168, %v173
    %v178 = vsel %vm177, %v176, 8.0
    %v179 = vsel %vm170, %v178, inf
    %180 = vmin.xlane.f32.xlu0 %v179
    %v181 = vpop.xlane.xlu0 %180
    %v182 = vcvt.f32.s32.to.zero.pseudo %v181
    %183 = vst.msk [vmem:[%s7] sm:$0xf] %vm98, %v182
    // Predicated region
    $region26: #{_rl_loss_and_senti_labels.1} parent=1 // pred_check
      _
    $region27: #{_rl_loss_and_senti_labels.1} parent=1 // pred_check_branch
      %185 = sbr.rel (0) target = $region29
    $region28: #{_rl_loss_and_senti_labels.1} parent=1 // pred_region
      %187 = vsyncadd [#allocation3], 0
      %s189 = sshll.u32 %s6, 4
      %s190 = int_to_ptr.vmem [resolvable:$true] %s189
      %192 = dma.smem_to_vmem [#allocation2], 16, %s190, [#allocation3]
    $region29: #{_rl_loss_and_senti_labels.1} parent=1 // pred_fallthru
      _
    // Predicated region
    $region30: #{_rl_loss_and_senti_labels.1} parent=1 // pred_check
      _
    $region31: #{_rl_loss_and_senti_labels.1} parent=1 // pred_check_branch
      %194 = sbr.rel (0) target = $region33
    $region32: #{_rl_loss_and_senti_labels.1} parent=1 // pred_region
      _
    $region33: #{_rl_loss_and_senti_labels.1} parent=1 // pred_fallthru
      _
    // Predicated region
    $region34: #{_rl_loss_and_senti_labels.1} parent=1 // pred_check
      _
    $region35: #{_rl_loss_and_senti_labels.1} parent=1 // pred_check_branch
      %196 = sbr.rel (0) target = $region37
    $region36: #{_rl_loss_and_senti_labels.1} parent=1 // pred_region
      %198 = dma.done [#allocation3], 16
    $region37: #{_rl_loss_and_senti_labels.1} parent=1 // pred_fallthru
      _
    // Predicated region
    $region38: #{_rl_loss_and_senti_labels.1} parent=1 // pred_check
      _
    $region39: #{_rl_loss_and_senti_labels.1} parent=1 // pred_check_branch
      %200 = sbr.rel (0) target = $region41
    $region40: #{_rl_loss_and_senti_labels.1} parent=1 // pred_region
      _
    $region41: #{_rl_loss_and_senti_labels.1} parent=1 // pred_fallthru
      _
    %201 = sfence
    %202 = vsyncpa [#allocation3], 1

</llo_original>
